<compile_context>
chip_gen: v5e
topology: v5e:2x2
jax: 0.10.0
libtpu: 0.0.40
codegen_flags: <defaults>
</compile_context>

<pallas_src>
import jax
import jax.numpy as jnp
from jax import lax
from jax.experimental import pallas as pl
from jax.experimental.pallas import tpu as pltpu


def _vmem_budget():
    """Generation-aware VMEM budget (bytes) for one grid step's working set."""
    try:
        cap = int(pltpu.get_tpu_info().vmem_capacity_bytes)
    except Exception:
        cap = 64 << 20                      # conservative (v7x per-core VMEM)
    return int(min(40 << 20, cap // 3))


def _make_aspp_kernel(TH, pad_h, dys):
    """Kernel closed over the static tile geometry and row-offset table.

    Per grid step it computes, for a TH-row output tile,
        out = sum_dy  x_rows(dy) @ B_dy  + bias
    where x_rows(dy) is a [TH, Wp*C] sublane-shifted slab of the halo'd window
    and B_dy is the precomputed block-banded [Wp*C, W*D] weight folding the dx
    shifts, the channel contraction and the final 1x1 conv of every tap with
    that row offset.  K = Wp*C per dot (good MXU fill), lane-dense W*D output.
    """

    def kernel(x_ref, w_ref, b_ref, o_ref):
        acc = None
        for i, dy in enumerate(dys):
            lhs = x_ref[0, pad_h + dy:pad_h + dy + TH, :]      # [TH, Wp*C] bf16
            part = jnp.dot(lhs, w_ref[i], preferred_element_type=jnp.float32)
            acc = part if acc is None else acc + part
        o_ref[0] = acc + b_ref[0]          # folded biases + GAP branch, [1, W*D]

    return kernel


def aspp_pallas(x_nchw, p):
    """x_nchw: [N, C, H, W] float32.  Returns [N, depth, H, W] like the torch module."""
    N, C, H, W = map(int, x_nchw.shape)
    D = int(p["b1"].shape[0])

    x = jnp.transpose(x_nchw, (0, 2, 3, 1)).astype(jnp.float32)        # NHWC

    # ---- fold the final 1x1 conv into every branch weight (exact, f32) ----
    wout = jnp.transpose(p["w_out"][:, :, 0, 0], (1, 0)).reshape(5, D, D)
    wimg = jnp.transpose(p["w_img"][:, :, 0, 0], (1, 0))               # [C, D]
    w1 = jnp.transpose(p["w1"][:, :, 0, 0], (1, 0))                    # [C, D]

    def w3x3(w):                                                       # [D,C,3,3] -> [3,3,C,D]
        return jnp.transpose(w, (2, 3, 1, 0))

    w1_eff = w1 @ wout[1]
    w6_eff = jnp.einsum("yxcd,de->yxce", w3x3(p["w6"]), wout[2])
    w12_eff = jnp.einsum("yxcd,de->yxce", w3x3(p["w12"]), wout[3])
    w18_eff = jnp.einsum("yxcd,de->yxce", w3x3(p["w18"]), wout[4])

    # Tap table {(dy, dx): folded [C, D] weight}.  Duplicate (center) taps merge;
    # taps that only ever read zero padding for this (H, W) are dropped (exact).
    taps = {}

    def add_tap(dy, dx, w):
        if abs(dy) >= H or abs(dx) >= W:
            return
        taps[(dy, dx)] = taps[(dy, dx)] + w if (dy, dx) in taps else w

    add_tap(0, 0, w1_eff)
    for dil, weff in ((6, w6_eff), (12, w12_eff), (18, w18_eff)):
        for ky in range(3):
            for kx in range(3):
                add_tap((ky - 1) * dil, (kx - 1) * dil, weff[ky, kx])

    pad_h = max(abs(dy) for dy, _ in taps)
    pad_w = max(abs(dx) for _, dx in taps)
    Wp = W + 2 * pad_w
    WD = W * D

    # ---- fold dx shifts + channel contraction into one block-banded matrix per
    # distinct row offset dy:  B_dy[(x+pad_w+dx)*C + c, x*D + d] += w_tap[c, d].
    # (For very large C*W these matrices would be VMEM-heavy; for ASPP-scale
    # shapes they are a few hundred KiB of bf16.)
    dys = tuple(sorted({dy for dy, _ in taps}))
    n_dy = len(dys)
    xsel = jnp.arange(W)
    bands = []
    for dy in dys:
        b4 = jnp.zeros((Wp, C, W, D), jnp.float32)
        for (tdy, tdx), w_t in taps.items():
            if tdy != dy:
                continue
            place = jnp.zeros((Wp, W), jnp.float32).at[xsel + pad_w + tdx, xsel].set(1.0)
            b4 = b4 + jnp.einsum("pw,cd->pcwd", place, w_t)
        bands.append(b4.reshape(Wp * C, WD))
    w_band = jnp.stack(bands).astype(jnp.bfloat16)                     # [n_dy, Wp*C, W*D]

    # ---- GAP branch + all biases -> one per-batch additive [1, W*D] row ----
    # (bilinear upsample of a 1x1 map == constant broadcast, so it folds exactly)
    bias = (p["b1"] @ wout[1] + p["b6"] @ wout[2] + p["b12"] @ wout[3]
            + p["b18"] @ wout[4] + p["b_out"])                         # [D]
    gm = jnp.mean(x, axis=(1, 2))                                      # [N, C]
    img_vec = (gm @ wimg + p["b_img"][None, :]) @ wout[0]              # [N, D]
    bias_wd = jnp.tile(img_vec + bias[None, :], (1, W))                # [N, W*D]
    bias_wd = bias_wd.reshape(N, 1, WD).astype(jnp.float32)

    # ---- row tiling: VMEM-budgeted, lane-dense, no host-side window gather ----
    budget = _vmem_budget()

    def tile_cost(th):      # double-buffered input window + output + weights
        return (2 * (th + 2 * pad_h) * Wp * C * 2 + 2 * th * WD * 4
                + 2 * int(w_band.size) * 2)

    if tile_cost(H) <= budget:
        TH, n_rt, use_element = H, 1, False          # whole image per grid step
    else:
        cands = [t for t in range(8, H + 1, 8) if tile_cost(t) <= budget]
        divs = [t for t in cands if H % t == 0]
        TH = max(divs) if divs else (max(cands) if cands else 8)
        n_rt, use_element = pl.cdiv(H, TH), True

    if not use_element and N == 1 and H % 16 == 0:
        # v7x has two TensorCores; keep the grid size >= 2 so both get work.
        TH, n_rt, use_element = H // 2, 2, True

    Hp = n_rt * TH
    THp = TH + 2 * pad_h
    extra = (-THp) % 8 if use_element else 0         # sublane-align Element windows
    THp += extra

    x_bf = x.astype(jnp.bfloat16)
    xpad = jnp.pad(x_bf, ((0, 0), (pad_h, pad_h + (Hp - H) + extra),
                          (pad_w, pad_w), (0, 0)))
    rows = Hp + 2 * pad_h + extra
    xpad = xpad.reshape(N, rows, Wp * C)             # lane-dense activation rows

    if use_element:
        # Overlapping halo'd row windows read straight from xpad via an
        # element offset (r*TH) -> no duplicated / gathered activation in HBM.
        x_spec = pl.BlockSpec((1, pl.Element(THp), Wp * C),
                              lambda n, r: (n, r * TH, 0))
    else:
        x_spec = pl.BlockSpec((1, THp, Wp * C), lambda n, r: (n, 0, 0))

    vmem_limit = int(min(48 << 20, max(16 << 20, tile_cost(TH) + (8 << 20))))

    out = pl.pallas_call(
        _make_aspp_kernel(TH, pad_h, dys),
        out_shape=jax.ShapeDtypeStruct((N, Hp, WD), jnp.float32),
        grid=(N, n_rt),
        in_specs=[
            x_spec,
            pl.BlockSpec((n_dy, Wp * C, WD), lambda n, r: (0, 0, 0)),
            pl.BlockSpec((1, 1, WD), lambda n, r: (n, 0, 0)),
        ],
        out_specs=pl.BlockSpec((1, TH, WD), lambda n, r: (n, r, 0)),
        compiler_params=pltpu.CompilerParams(
            dimension_semantics=("parallel", "parallel"),
            vmem_limit_bytes=vmem_limit),
    )(xpad, w_band, bias_wd)

    out = out[:, :H].reshape(N, H, W, D)
    return jnp.transpose(out, (0, 3, 1, 2))          # back to NCHW


def aspp_reference(x, p):
    """Pure-JAX reference matching the PyTorch forward (NCHW, f32)."""
    dn = ("NCHW", "OIHW", "NCHW")

    def conv(z, w, b, d=1, pad=0):
        y = lax.conv_general_dilated(z, w, (1, 1), [(pad, pad), (pad, pad)],
                                     rhs_dilation=(d, d), dimension_numbers=dn)
        return y + b.reshape(1, -1, 1, 1)

    N, C, H, W = x.shape
    gm = jnp.mean(x, axis=(2, 3), keepdims=True)
    imgf = conv(gm, p["w_img"], p["b_img"])
    imgf = jnp.broadcast_to(imgf, (N, imgf.shape[1], H, W))   # bilinear of 1x1 map
    a1 = conv(x, p["w1"], p["b1"])
    a6 = conv(x, p["w6"], p["b6"], d=6, pad=6)
    a12 = conv(x, p["w12"], p["b12"], d=12, pad=12)
    a18 = conv(x, p["w18"], p["b18"], d=18, pad=18)
    cat = jnp.concatenate([imgf, a1, a6, a12, a18], axis=1)
    return conv(cat, p["w_out"], p["b_out"])


def init_params(key, C, D):
    ks = jax.random.split(key, 12)

    def u(k, shape, fan_in):
        bound = 1.0 / jnp.sqrt(jnp.float32(fan_in))
        return jax.random.uniform(k, shape, jnp.float32, -bound, bound)

    return {
        "w_img": u(ks[0], (D, C, 1, 1), C),      "b_img": u(ks[1], (D,), C),
        "w1":    u(ks[2], (D, C, 1, 1), C),      "b1":    u(ks[3], (D,), C),
        "w6":    u(ks[4], (D, C, 3, 3), C * 9),  "b6":    u(ks[5], (D,), C * 9),
        "w12":   u(ks[6], (D, C, 3, 3), C * 9),  "b12":   u(ks[7], (D,), C * 9),
        "w18":   u(ks[8], (D, C, 3, 3), C * 9),  "b18":   u(ks[9], (D,), C * 9),
        "w_out": u(ks[10], (D, 5 * D, 1, 1), 5 * D), "b_out": u(ks[11], (D,), 5 * D),
    }


if __name__ == "__main__":
    # Small shapes consistent with the module (in_channel=C, depth=D); W*D = 128
    # so the kernel's output rows are exactly lane-dense.
    N, C, D, H, W = 2, 8, 8, 16, 16
    key = jax.random.PRNGKey(0)
    kx, kp = jax.random.split(key)
    x = jax.random.normal(kx, (N, C, H, W), jnp.float32)
    params = init_params(kp, C, D)

    out = jax.block_until_ready(aspp_pallas(x, params))
    ref = jax.block_until_ready(aspp_reference(x, params))

    assert out.shape == (N, D, H, W), out.shape
    # bf16 MXU inputs with f32 accumulation -> compare at bf16-level tolerance.
    err = float(jnp.max(jnp.abs(out - ref)))
    assert jnp.allclose(out, ref, atol=1e-2, rtol=1e-2), err
    print("KERNEL_OK")
</pallas_src>

<mosaic_0001>
module attributes {stable_mosaic.version = 11 : i64} {
  func.func @kernel(%arg0: i32, %arg1: i32, %arg2: memref<1x40x320xbf16, #tpu.memory_space<vmem>>, %arg3: memref<5x320x128xbf16, #tpu.memory_space<vmem>>, %arg4: memref<1x1x128xf32, #tpu.memory_space<vmem>>, %arg5: memref<1x16x128xf32, #tpu.memory_space<vmem>>) attributes {dimension_semantics = [#tpu.dimension_semantics<parallel>, #tpu.dimension_semantics<parallel>], iteration_bounds = array<i64: 2, 1>, scalar_prefetch = 0 : i64, scratch_operands = 0 : i64, tpu.core_type = #tpu.core_type<tc>, window_params = [{transform_indices = @transform_0, window_bounds = array<i64: 1, 40, 320>}, {pipeline_mode = #tpu.pipeline_mode<synchronous>, transform_indices = @transform_1, window_bounds = array<i64: 5, 320, 128>}, {transform_indices = @transform_2, window_bounds = array<i64: 1, 1, 128>}, {transform_indices = @transform_3, window_bounds = array<i64: 1, 16, 128>}]} {
    %c0 = arith.constant 0 : index
    %c0_0 = arith.constant 0 : index
    %c0_1 = arith.constant 0 : index
    %0 = vector.load %arg2[%c0, %c0_0, %c0_1] : memref<1x40x320xbf16, #tpu.memory_space<vmem>>, vector<1x16x320xbf16>
    %1 = vector.shape_cast %0 : vector<1x16x320xbf16> to vector<16x320xbf16>
    %c0_2 = arith.constant 0 : index
    %c0_3 = arith.constant 0 : index
    %c0_4 = arith.constant 0 : index
    %2 = vector.load %arg3[%c0_2, %c0_3, %c0_4] : memref<5x320x128xbf16, #tpu.memory_space<vmem>>, vector<1x320x128xbf16>
    %3 = vector.shape_cast %2 : vector<1x320x128xbf16> to vector<320x128xbf16>
    %cst = arith.constant dense<0.000000e+00> : vector<16x128xf32>
    %4 = tpu.matmul %1, %3, %cst {dimension_numbers = #tpu.dot_dimension_numbers<[1], [0], [0], [1], [0, 0, 1, 1], [], []>} : vector<16x320xbf16>, vector<320x128xbf16>, vector<16x128xf32> -> vector<16x128xf32>
    %c0_5 = arith.constant 0 : index
    %c6 = arith.constant 6 : index
    %c0_6 = arith.constant 0 : index
    %5 = vector.load %arg2[%c0_5, %c6, %c0_6] : memref<1x40x320xbf16, #tpu.memory_space<vmem>>, vector<1x16x320xbf16>
    %6 = vector.shape_cast %5 : vector<1x16x320xbf16> to vector<16x320xbf16>
    %c1 = arith.constant 1 : index
    %c0_7 = arith.constant 0 : index
    %c0_8 = arith.constant 0 : index
    %7 = vector.load %arg3[%c1, %c0_7, %c0_8] : memref<5x320x128xbf16, #tpu.memory_space<vmem>>, vector<1x320x128xbf16>
    %8 = vector.shape_cast %7 : vector<1x320x128xbf16> to vector<320x128xbf16>
    %cst_9 = arith.constant dense<0.000000e+00> : vector<16x128xf32>
    %9 = tpu.matmul %6, %8, %cst_9 {dimension_numbers = #tpu.dot_dimension_numbers<[1], [0], [0], [1], [0, 0, 1, 1], [], []>} : vector<16x320xbf16>, vector<320x128xbf16>, vector<16x128xf32> -> vector<16x128xf32>
    %10 = arith.addf %4, %9 : vector<16x128xf32>
    %c0_10 = arith.constant 0 : index
    %c12 = arith.constant 12 : index
    %c0_11 = arith.constant 0 : index
    %11 = vector.load %arg2[%c0_10, %c12, %c0_11] : memref<1x40x320xbf16, #tpu.memory_space<vmem>>, vector<1x16x320xbf16>
    %12 = vector.shape_cast %11 : vector<1x16x320xbf16> to vector<16x320xbf16>
    %c2 = arith.constant 2 : index
    %c0_12 = arith.constant 0 : index
    %c0_13 = arith.constant 0 : index
    %13 = vector.load %arg3[%c2, %c0_12, %c0_13] : memref<5x320x128xbf16, #tpu.memory_space<vmem>>, vector<1x320x128xbf16>
    %14 = vector.shape_cast %13 : vector<1x320x128xbf16> to vector<320x128xbf16>
    %cst_14 = arith.constant dense<0.000000e+00> : vector<16x128xf32>
    %15 = tpu.matmul %12, %14, %cst_14 {dimension_numbers = #tpu.dot_dimension_numbers<[1], [0], [0], [1], [0, 0, 1, 1], [], []>} : vector<16x320xbf16>, vector<320x128xbf16>, vector<16x128xf32> -> vector<16x128xf32>
    %16 = arith.addf %10, %15 : vector<16x128xf32>
    %c0_15 = arith.constant 0 : index
    %c18 = arith.constant 18 : index
    %c0_16 = arith.constant 0 : index
    %17 = vector.load %arg2[%c0_15, %c18, %c0_16] : memref<1x40x320xbf16, #tpu.memory_space<vmem>>, vector<1x16x320xbf16>
    %18 = vector.shape_cast %17 : vector<1x16x320xbf16> to vector<16x320xbf16>
    %c3 = arith.constant 3 : index
    %c0_17 = arith.constant 0 : index
    %c0_18 = arith.constant 0 : index
    %19 = vector.load %arg3[%c3, %c0_17, %c0_18] : memref<5x320x128xbf16, #tpu.memory_space<vmem>>, vector<1x320x128xbf16>
    %20 = vector.shape_cast %19 : vector<1x320x128xbf16> to vector<320x128xbf16>
    %cst_19 = arith.constant dense<0.000000e+00> : vector<16x128xf32>
    %21 = tpu.matmul %18, %20, %cst_19 {dimension_numbers = #tpu.dot_dimension_numbers<[1], [0], [0], [1], [0, 0, 1, 1], [], []>} : vector<16x320xbf16>, vector<320x128xbf16>, vector<16x128xf32> -> vector<16x128xf32>
    %22 = arith.addf %16, %21 : vector<16x128xf32>
    %c0_20 = arith.constant 0 : index
    %c24 = arith.constant 24 : index
    %c0_21 = arith.constant 0 : index
    %23 = vector.load %arg2[%c0_20, %c24, %c0_21] : memref<1x40x320xbf16, #tpu.memory_space<vmem>>, vector<1x16x320xbf16>
    %24 = vector.shape_cast %23 : vector<1x16x320xbf16> to vector<16x320xbf16>
    %c4 = arith.constant 4 : index
    %c0_22 = arith.constant 0 : index
    %c0_23 = arith.constant 0 : index
    %25 = vector.load %arg3[%c4, %c0_22, %c0_23] : memref<5x320x128xbf16, #tpu.memory_space<vmem>>, vector<1x320x128xbf16>
    %26 = vector.shape_cast %25 : vector<1x320x128xbf16> to vector<320x128xbf16>
    %cst_24 = arith.constant dense<0.000000e+00> : vector<16x128xf32>
    %27 = tpu.matmul %24, %26, %cst_24 {dimension_numbers = #tpu.dot_dimension_numbers<[1], [0], [0], [1], [0, 0, 1, 1], [], []>} : vector<16x320xbf16>, vector<320x128xbf16>, vector<16x128xf32> -> vector<16x128xf32>
    %28 = arith.addf %22, %27 : vector<16x128xf32>
    %c0_25 = arith.constant 0 : index
    %c0_26 = arith.constant 0 : index
    %c0_27 = arith.constant 0 : index
    %29 = vector.load %arg4[%c0_25, %c0_26, %c0_27] : memref<1x1x128xf32, #tpu.memory_space<vmem>>, vector<1x1x128xf32>
    %30 = vector.shape_cast %29 : vector<1x1x128xf32> to vector<1x128xf32>
    %31 = vector.broadcast %30 : vector<1x128xf32> to vector<16x128xf32>
    %32 = arith.addf %28, %31 : vector<16x128xf32>
    %c0_28 = arith.constant 0 : index
    %c0_29 = arith.constant 0 : index
    %c0_30 = arith.constant 0 : index
    %33 = vector.load %arg5[%c0_28, %c0_29, %c0_30] : memref<1x16x128xf32, #tpu.memory_space<vmem>>, vector<1x16x128xf32>
    %34 = vector.shape_cast %33 : vector<1x16x128xf32> to vector<16x128xf32>
    %35 = vector.shape_cast %32 : vector<16x128xf32> to vector<1x16x128xf32>
    tpu.vector_store %arg5[%c0_28, %c0_29, %c0_30], %35 {strides = array<i32>} : memref<1x16x128xf32, #tpu.memory_space<vmem>>, vector<1x16x128xf32>,
    return
  }
  func.func @transform_0(%arg0: i32, %arg1: i32) -> (i32, i32, i32) {
    %c0_i32 = arith.constant 0 : i32
    %c0_i32_0 = arith.constant 0 : i32
    %c0_i32_1 = arith.constant 0 : i32
    return %arg0, %c0_i32, %c0_i32_0 : i32, i32, i32
  }
  func.func @transform_1(%arg0: i32, %arg1: i32) -> (i32, i32, i32) {
    %c0_i32 = arith.constant 0 : i32
    %c0_i32_0 = arith.constant 0 : i32
    %c0_i32_1 = arith.constant 0 : i32
    %c0_i32_2 = arith.constant 0 : i32
    return %c0_i32, %c0_i32_0, %c0_i32_1 : i32, i32, i32
  }
  func.func @transform_2(%arg0: i32, %arg1: i32) -> (i32, i32, i32) {
    %c0_i32 = arith.constant 0 : i32
    %c0_i32_0 = arith.constant 0 : i32
    %c0_i32_1 = arith.constant 0 : i32
    return %arg0, %c0_i32, %c0_i32_0 : i32, i32, i32
  }
  func.func @transform_3(%arg0: i32, %arg1: i32) -> (i32, i32, i32) {
    %c0_i32 = arith.constant 0 : i32
    %c0_i32_0 = arith.constant 0 : i32
    return %arg0, %arg1, %c0_i32 : i32, i32, i32
  }
}

</mosaic_0001>

<llo_original>
// kernel: tpu_custom_call.1
$region0: #{tpu_custom_call.1}
  #allocation0 [shape = 'u32[]', space=smem, size = 0x4, offset = 0x4, fixed_abs, tag = 'smem constant byte address 0x4 - core index']
  #allocation1 [shape = 'u32[72,128]{1,0:T(1,128)}', space=vmem, size = 0x9000, scoped, tag = 'internal scratch']
  %s0 = inlined_call_operand.hbm [shape: bf16[2,40,320], index: 0, kind: input, shape index: {}]
  %s1 = inlined_call_operand.hbm [shape: bf16[5,320,128], index: 1, kind: input, shape index: {}]
  %s2 = inlined_call_operand.hbm [shape: f32[2,1,128], index: 2, kind: input, shape index: {}]
  %s3 = inlined_call_operand.hbm [shape: f32[2,16,128], index: 3, kind: output, shape index: {}]
  %s4 = sld [smem:[#allocation0]]
  $region57: #{tpu_custom_call.1} parent=0
    _
  %s6 = ssub.s32 1, %s4
  %s7 = scalar_select 0, %s6, %s4
  $region1: #{tpu_custom_call.1} parent=0
    #allocation2 [shape = 'u8[61440]{0}', space=vmem, size = 0xf000, scoped, tag = 'input window, operand 0']
    #allocation3 [shape = 's32[2]{0}', space=sflag, size = 0x8, scoped, tag = 'scoped memory for tpu_custom_call.1']
    #allocation4 [shape = 's32[2]{0}', space=sflag, size = 0x8, scoped, tag = 'scoped memory for tpu_custom_call.1']
    #allocation5 [shape = 'u8[409600]{0}', space=vmem, size = 0x64000, scoped, tag = 'input window, operand 1, single buffered']
    #allocation6 [shape = 's32[1]{0}', space=sflag, size = 0x4, scoped, tag = 'scoped memory for tpu_custom_call.1']
    #allocation7 [shape = 'u8[1024]{0}', space=vmem, size = 0x400, scoped, tag = 'input window, operand 2']
    #allocation8 [shape = 'u8[16384]{0}', space=vmem, size = 0x4000, scoped, tag = 'output window, operand 0']
    %8 = vsyncpa [#allocation3], 0
    %s9 = scalar_lea.sflag [#allocation3], 1
    %10 = vsyncpa %s9, 0
    %11 = vsyncpa [#allocation6], 0
    %12 = vsyncpa [#allocation4], 0
    %s13 = scalar_lea.sflag [#allocation4], 1
    %14 = vsyncpa %s13, 0
    loop: start=0, step=1, limit=4
    $region2: #{tpu_custom_call.1} parent=1 // loop_pre_header
      _
    $region3: #{tpu_custom_call.1} parent=1 // loop_header
      %s16 = sphi 0, %s20
      %p17 = scmp.ge.s32.totalorder %s16, 4
      %s23 = sphi 0, %s35
      %s24 = sphi 0, %s31
      %s25 = sphi 0, %s23
      %s26 = sphi 0, %s24
      %s27 = sphi 0, %s25
      %s28 = sphi 0, %s26
      %s38 = sphi 0, %s40
      %s41 = sphi 0, %s38
      %s42 = sphi 0, %s41
      %s58 = sphi 0, %s42
      %s62 = sphi 0, %s62
      %s64 = sphi 0, %s62
      %s65 = sphi 0, %s64
      %s79 = sphi 0, %s65
      %s85 = sphi 0, %s87
      %s88 = sphi 0, %s85
      %s89 = sphi 0, %s88
      %s105 = sphi 0, %s89
      %s113 = sphi 0, %s115
      %s116 = sphi 0, %s113
      %s117 = sphi 0, %s116
      %s133 = sphi 0, %s117
    $region4: #{tpu_custom_call.1} parent=1 // loop_header_branch
      %19 = sbr.rel (%p17) target = $region8
    $region5: #{tpu_custom_call.1} parent=1 // loop_body
      %s21 = ssub.s32 %s16, 1
      %s22 = ssub.s32 %s16, 2
      %s29 = sadd.s32 1, %s24
      %p30 = scmp.ge.s32.totalorder %s29, 1
      %s31 = scalar_select %p30, 0, %s29
      %s32 = sadd.s32 1, %s23
      %s33 = scalar_select %p30, %s32, %s23
      %p34 = scmp.ge.s32.totalorder %s33, 2
      %s35 = scalar_select %p34, 0, %s33
      %s36 = ssub.s32 %s23, %s35
      %p37 = scmp.eq.s32.totalorder %s36, 0
      %s39 = sadd.s32 %s38, 1
      %s40 = scalar_select %p37, %s38, %s39
      %p43 = pneg %p37
      %p44 = scmp.eq.s32.totalorder %s16, 1
      %p45 = por %p43, %p44
      %p46 = scmp.ne.s32.totalorder %s38, %s41
      %p47 = scmp.eq.s32.totalorder %s16, 0
      %p48 = por %p46, %p47
      %p49 = scmp.ne.s32.totalorder %s38, %s41
      %p50 = scmp.eq.s32.totalorder %s21, 1
      %p51 = por %p49, %p50
      %p52 = scmp.ne.s32.totalorder %s41, %s42
      %p53 = scmp.eq.s32.totalorder %s21, 0
      %p54 = por %p52, %p53
      %p55 = scmp.ne.s32.totalorder %s41, %s42
      %p56 = scmp.eq.s32.totalorder %s22, 1
      %p57 = por %p55, %p56
      %p59 = scmp.ne.s32.totalorder %s42, %s58
      %p60 = scmp.eq.s32.totalorder %s22, 0
      %p61 = por %p59, %p60
      %s63 = sadd.s32 %s62, 1
      %p66 = scmp.eq.s32.totalorder %s16, 1
      %p67 = scmp.ne.s32.totalorder %s62, %s64
      %p68 = scmp.eq.s32.totalorder %s16, 0
      %p69 = por %p67, %p68
      %p70 = scmp.ne.s32.totalorder %s62, %s64
      %p71 = scmp.eq.s32.totalorder %s21, 1
      %p72 = por %p70, %p71
      %p73 = scmp.ne.s32.totalorder %s64, %s65
      %p74 = scmp.eq.s32.totalorder %s21, 0
      %p75 = por %p73, %p74
      %p76 = scmp.ne.s32.totalorder %s64, %s65
      %p77 = scmp.eq.s32.totalorder %s22, 1
      %p78 = por %p76, %p77
      %p80 = scmp.ne.s32.totalorder %s65, %s79
      %p81 = scmp.eq.s32.totalorder %s22, 0
      %p82 = por %p80, %p81
      %s83 = ssub.s32 %s23, %s35
      %p84 = scmp.eq.s32.totalorder %s83, 0
      %s86 = sadd.s32 %s85, 1
      %s87 = scalar_select %p84, %s85, %s86
      %p90 = pneg %p84
      %p91 = scmp.eq.s32.totalorder %s16, 1
      %p92 = por %p90, %p91
      %p93 = scmp.ne.s32.totalorder %s85, %s88
      %p94 = scmp.eq.s32.totalorder %s16, 0
      %p95 = por %p93, %p94
      %p96 = scmp.ne.s32.totalorder %s85, %s88
      %p97 = scmp.eq.s32.totalorder %s21, 1
      %p98 = por %p96, %p97
      %p99 = scmp.ne.s32.totalorder %s88, %s89
      %p100 = scmp.eq.s32.totalorder %s21, 0
      %p101 = por %p99, %p100
      %p102 = scmp.ne.s32.totalorder %s88, %s89
      %p103 = scmp.eq.s32.totalorder %s22, 1
      %p104 = por %p102, %p103
      %p106 = scmp.ne.s32.totalorder %s89, %s105
      %p107 = scmp.eq.s32.totalorder %s22, 0
      %p108 = por %p106, %p107
      %s109 = ssub.s32 %s23, %s35
      %s110 = ssub.s32 %s24, %s31
      %s111 = sor.u32 %s109, %s110
      %p112 = scmp.eq.s32.totalorder %s111, 0
      %s114 = sadd.s32 %s113, 1
      %s115 = scalar_select %p112, %s113, %s114
      %p118 = pneg %p112
      %p119 = scmp.eq.s32.totalorder %s16, 1
      %p120 = por %p118, %p119
      %p121 = scmp.ne.s32.totalorder %s113, %s116
      %p122 = scmp.eq.s32.totalorder %s16, 0
      %p123 = por %p121, %p122
      %p124 = scmp.ne.s32.totalorder %s113, %s116
      %p125 = scmp.eq.s32.totalorder %s21, 1
      %p126 = por %p124, %p125
      %p127 = scmp.ne.s32.totalorder %s116, %s117
      %p128 = scmp.eq.s32.totalorder %s21, 0
      %p129 = por %p127, %p128
      %p130 = scmp.ne.s32.totalorder %s116, %s117
      %p131 = scmp.eq.s32.totalorder %s22, 1
      %p132 = por %p130, %p131
      %p134 = scmp.ne.s32.totalorder %s117, %s133
      %p135 = scmp.eq.s32.totalorder %s22, 0
      %p136 = por %p134, %p135
      %p137 = scmp.le.s32.totalorder 1, %s16
      %p138 = scmp.lt.s32.totalorder %s16, 3
      %p139 = pnand %p137, %p138
      %p140 = pneg %p139
      // Predicated region
      $region9: #{tpu_custom_call.1} parent=5 // pred_check
        _
      $region10: #{tpu_custom_call.1} parent=5 // pred_check_branch
        %142 = sbr.rel (%p139) target = $region12
      $region11: #{tpu_custom_call.1} parent=5 // pred_region
        %s143 = ssub.s32 %s16, 1
        // Predicated region
        $region13: #{tpu_custom_call.1} parent=11 // pred_check
          %p144 = pneg %p75
        $region14: #{tpu_custom_call.1} parent=11 // pred_check_branch
          %146 = sbr.rel (%p144) target = $region16
        $region15: #{tpu_custom_call.1} parent=11 // pred_region
          %148 = vsyncadd [#allocation6], 0
          %s149 = sshll.u32 %s1, 4
          %s150 = int_to_ptr.hbm [resolvable:$true] %s149
          %s151 = sshll.u32 [#allocation5], 4
          %s152 = int_to_ptr.vmem [resolvable:$true] %s151
          %157 = dma.hbm_to_vmem [thread:$0]  %s150, 12800, %s152, [#allocation6], 64, 64, 4
        $region16: #{tpu_custom_call.1} parent=11 // pred_fallthru
          _
      $region12: #{tpu_custom_call.1} parent=5 // pred_fallthru
        _
      %p158 = scmp.lt.s32.totalorder %s16, 2
      // Predicated region
      $region17: #{tpu_custom_call.1} parent=5 // pred_check
        %p159 = pneg %p158
      $region18: #{tpu_custom_call.1} parent=5 // pred_check_branch
        %161 = sbr.rel (%p159) target = $region20
      $region19: #{tpu_custom_call.1} parent=5 // pred_region
        // Predicated region
        $region21: #{tpu_custom_call.1} parent=19 // pred_check
          %p162 = pneg %p48
        $region22: #{tpu_custom_call.1} parent=19 // pred_check_branch
          %164 = sbr.rel (%p162) target = $region24
        $region23: #{tpu_custom_call.1} parent=19 // pred_region
          %s165 = sand.u32 %s16, 1
          %s166 = scalar_lea.sflag [#allocation3], %s165
          %s167 = sand.u32 %s38, 1
          %s168 = smul.addr %s167, 60
          %s169 = scalar_lea.vmem [#allocation2], %s168
          %171 = vsyncadd %s166, 0
          %s172 = smul.addr %s23, 15
          %s173 = smul.addr %s172, 4
          %s174 = scalar_lea.hbm %s0, %s173
          %s175 = sshll.u32 %s174, 4
          %s176 = int_to_ptr.hbm [resolvable:$true] %s175
          %s177 = sshll.u32 %s169, 4
          %s178 = int_to_ptr.vmem [resolvable:$true] %s177
          %183 = dma.hbm_to_vmem [thread:$0]  %s176, 960, %s178, %s166, 192, 192, 12
        $region24: #{tpu_custom_call.1} parent=19 // pred_fallthru
          _
        // Predicated region
        $region25: #{tpu_custom_call.1} parent=19 // pred_check
          %p184 = pneg %p95
        $region26: #{tpu_custom_call.1} parent=19 // pred_check_branch
          %186 = sbr.rel (%p184) target = $region28
        $region27: #{tpu_custom_call.1} parent=19 // pred_region
          %s187 = sand.u32 %s16, 1
          %s188 = scalar_lea.sflag [#allocation3], %s187
          %s189 = sand.u32 %s85, 1
          %s190 = scalar_lea.vmem [#allocation7], %s189
          %192 = vsyncadd %s188, 0
          %s193 = scalar_lea.hbm %s2, %s23
          %s195 = sshll.u32 %s193, 4
          %s196 = int_to_ptr.hbm [resolvable:$true] %s195
          %s197 = sshll.u32 %s190, 4
          %s198 = int_to_ptr.vmem [resolvable:$true] %s197
          %200 = dma.hbm_to_vmem [thread:$0]  %s196, 16, %s198, %s188
        $region28: #{tpu_custom_call.1} parent=19 // pred_fallthru
          _
      $region20: #{tpu_custom_call.1} parent=5 // pred_fallthru
        _
      %p201 = scmp.le.s32.totalorder 1, %s16
      %p202 = scmp.lt.s32.totalorder %s16, 3
      %p203 = pnand %p201, %p202
      %p204 = pneg %p203
      // Predicated region
      $region29: #{tpu_custom_call.1} parent=5 // pred_check
        _
      $region30: #{tpu_custom_call.1} parent=5 // pred_check_branch
        %206 = sbr.rel (%p203) target = $region32
      $region31: #{tpu_custom_call.1} parent=5 // pred_region
        %s207 = ssub.s32 %s16, 1
        %s208 = sand.u32 %s21, 1
        %s209 = scalar_lea.sflag [#allocation3], %s208
        %s210 = sand.u32 %s41, 1
        %s211 = smul.addr %s210, 60
        %s212 = scalar_lea.vmem [#allocation2], %s211
        // Predicated region
        $region33: #{tpu_custom_call.1} parent=31 // pred_check
          %p213 = pneg %p54
        $region34: #{tpu_custom_call.1} parent=31 // pred_check_branch
          %215 = sbr.rel (%p213) target = $region36
        $region35: #{tpu_custom_call.1} parent=31 // pred_region
          %217 = dma.done %s209, 960
        $region36: #{tpu_custom_call.1} parent=31 // pred_fallthru
          _
        // Predicated region
        $region37: #{tpu_custom_call.1} parent=31 // pred_check
          %p218 = pneg %p75
        $region38: #{tpu_custom_call.1} parent=31 // pred_check_branch
          %220 = sbr.rel (%p218) target = $region40
        $region39: #{tpu_custom_call.1} parent=31 // pred_region
          %222 = dma.done [#allocation6], 12800
        $region40: #{tpu_custom_call.1} parent=31 // pred_fallthru
          _
        %s223 = sand.u32 %s21, 1
        %s224 = scalar_lea.sflag [#allocation3], %s223
        %s225 = sand.u32 %s88, 1
        %s226 = scalar_lea.vmem [#allocation7], %s225
        // Predicated region
        $region41: #{tpu_custom_call.1} parent=31 // pred_check
          %p227 = pneg %p101
        $region42: #{tpu_custom_call.1} parent=31 // pred_check_branch
          %229 = sbr.rel (%p227) target = $region44
        $region43: #{tpu_custom_call.1} parent=31 // pred_region
          %231 = dma.done %s224, 16
        $region44: #{tpu_custom_call.1} parent=31 // pred_fallthru
          _
        %s232 = sand.u32 %s21, 1
        %s233 = scalar_lea.sflag [#allocation3], %s232
        %s234 = sand.u32 %s41, 1
        %s235 = smul.addr %s234, 60
        %s236 = scalar_lea.vmem [#allocation2], %s235
        %p237 = pneg %p54
        %p238 = pneg %p51
        %p239 = pneg %p75
        %p240 = pneg %p72
        %s241 = sand.u32 %s21, 1
        %s242 = scalar_lea.sflag [#allocation3], %s241
        %s243 = sand.u32 %s88, 1
        %s244 = scalar_lea.vmem [#allocation7], %s243
        %p245 = pneg %p101
        %p246 = pneg %p98
        %p247 = pneg %p129
        %p248 = pneg %p126
        %s249 = sand.u32 %s116, 1
        %s250 = scalar_lea.sflag [#allocation4], %s249
        %s251 = sand.u32 %s116, 1
        %s252 = smul.addr %s251, 16
        %s253 = scalar_lea.vmem [#allocation8], %s252
        %s254 = smul.u32 2, %s26
        %v256 = vld [vmem:[%s212] sm:$0xff]
        %v257 = vld [vmem:[%s212 + $0x8] sm:$0xf]
        %v258 = vld [vmem:[%s212 + $0xc] sm:$0xff]
        %v259 = vld [vmem:[%s212 + $0x14] sm:$0xf]
        %v260 = vld [vmem:[#allocation5] sm:$0xf]
        %v261 = vld [vmem:[#allocation5 + $0x4] sm:$0xf]
        %v262 = vld [vmem:[#allocation5 + $0x8] sm:$0xf]
        %v263 = vld [vmem:[#allocation5 + $0xc] sm:$0xf]
        %v264 = vld [vmem:[#allocation5 + $0x10] sm:$0xf]
        %v265 = vld [vmem:[#allocation5 + $0x14] sm:$0xf]
        %v266 = vld [vmem:[#allocation5 + $0x18] sm:$0xf]
        %v267 = vld [vmem:[#allocation5 + $0x1c] sm:$0xf]
        %v268 = vld [vmem:[#allocation5 + $0x20] sm:$0xf]
        %v269 = vld [vmem:[#allocation5 + $0x24] sm:$0xf]
        %v270 = vld [vmem:[#allocation5 + $0x28] sm:$0xf]
        %v271 = vld [vmem:[#allocation5 + $0x2c] sm:$0xf]
        %v272 = vld [vmem:[#allocation5 + $0x30] sm:$0xf]
        %v273 = vld [vmem:[#allocation5 + $0x34] sm:$0xf]
        %v274 = vld [vmem:[#allocation5 + $0x38] sm:$0xf]
        %v275 = vld [vmem:[#allocation5 + $0x3c] sm:$0xf]
        %v276 = vld [vmem:[#allocation5 + $0x40] sm:$0xf]
        %v277 = vld [vmem:[#allocation5 + $0x44] sm:$0xf]
        %v278 = vld [vmem:[#allocation5 + $0x48] sm:$0xf]
        %v279 = vld [vmem:[#allocation5 + $0x4c] sm:$0xf]
        %v280 = vld [vmem:[#allocation5 + $0x50] sm:$0xf]
        %v281 = vld [vmem:[#allocation5 + $0x54] sm:$0xf]
        %v282 = vld [vmem:[#allocation5 + $0x58] sm:$0xf]
        %v283 = vld [vmem:[#allocation5 + $0x5c] sm:$0xf]
        %v284 = vld [vmem:[#allocation5 + $0x60] sm:$0xf]
        %v285 = vld [vmem:[#allocation5 + $0x64] sm:$0xf]
        %v286 = vld [vmem:[#allocation5 + $0x68] sm:$0xf]
        %v287 = vld [vmem:[#allocation5 + $0x6c] sm:$0xf]
        %v288 = vld [vmem:[#allocation5 + $0x70] sm:$0xf]
        %v289 = vld [vmem:[#allocation5 + $0x74] sm:$0xf]
        %v290 = vld [vmem:[#allocation5 + $0x78] sm:$0xf]
        %v291 = vld [vmem:[#allocation5 + $0x7c] sm:$0xf]
        %v292 = vld [vmem:[#allocation5 + $0x80] sm:$0xf]
        %v293 = vld [vmem:[#allocation5 + $0x84] sm:$0xf]
        %v294 = vld [vmem:[#allocation5 + $0x88] sm:$0xf]
        %v295 = vld [vmem:[#allocation5 + $0x8c] sm:$0xf]
        %v296 = vld [vmem:[#allocation5 + $0x90] sm:$0xf]
        %v297 = vld [vmem:[#allocation5 + $0x94] sm:$0xf]
        %v298 = vld [vmem:[#allocation5 + $0x98] sm:$0xf]
        %v299 = vld [vmem:[#allocation5 + $0x9c] sm:$0xf]
        %v300 = vld [vmem:[%s212] sm:$0x88]
        %v301 = vld [vmem:[%s212 + $0x8] sm:$0x8]
        %v302 = vld [vmem:[%s212 + $0x18] sm:$0x77]
        %v303 = vld [vmem:[%s212 + $0x20] sm:$0x7]
        %s304 = scalar_lea.vmem [#allocation5], 160
        %v305 = vld [vmem:[%s304] sm:$0xf]
        %v306 = vld [vmem:[%s304 + $0x4] sm:$0xf]
        %v307 = vld [vmem:[%s304 + $0x8] sm:$0xf]
        %v308 = vld [vmem:[%s304 + $0xc] sm:$0xf]
        %v309 = vld [vmem:[%s304 + $0x10] sm:$0xf]
        %v310 = vld [vmem:[%s304 + $0x14] sm:$0xf]
        %v311 = vld [vmem:[%s304 + $0x18] sm:$0xf]
        %v312 = vld [vmem:[%s304 + $0x1c] sm:$0xf]
        %v313 = vld [vmem:[%s304 + $0x20] sm:$0xf]
        %v314 = vld [vmem:[%s304 + $0x24] sm:$0xf]
        %v315 = vld [vmem:[%s304 + $0x28] sm:$0xf]
        %v316 = vld [vmem:[%s304 + $0x2c] sm:$0xf]
        %v317 = vld [vmem:[%s304 + $0x30] sm:$0xf]
        %v318 = vld [vmem:[%s304 + $0x34] sm:$0xf]
        %v319 = vld [vmem:[%s304 + $0x38] sm:$0xf]
        %v320 = vld [vmem:[%s304 + $0x3c] sm:$0xf]
        %v321 = vld [vmem:[%s304 + $0x40] sm:$0xf]
        %v322 = vld [vmem:[%s304 + $0x44] sm:$0xf]
        %v323 = vld [vmem:[%s304 + $0x48] sm:$0xf]
        %v324 = vld [vmem:[%s304 + $0x4c] sm:$0xf]
        %v325 = vld [vmem:[%s304 + $0x50] sm:$0xf]
        %v326 = vld [vmem:[%s304 + $0x54] sm:$0xf]
        %v327 = vld [vmem:[%s304 + $0x58] sm:$0xf]
        %v328 = vld [vmem:[%s304 + $0x5c] sm:$0xf]
        %v329 = vld [vmem:[%s304 + $0x60] sm:$0xf]
        %v330 = vld [vmem:[%s304 + $0x64] sm:$0xf]
        %v331 = vld [vmem:[%s304 + $0x68] sm:$0xf]
        %v332 = vld [vmem:[%s304 + $0x6c] sm:$0xf]
        %v333 = vld [vmem:[%s304 + $0x70] sm:$0xf]
        %v334 = vld [vmem:[%s304 + $0x74] sm:$0xf]
        %v335 = vld [vmem:[%s304 + $0x78] sm:$0xf]
        %v336 = vld [vmem:[%s304 + $0x7c] sm:$0xf]
        %v337 = vld [vmem:[%s304 + $0x80] sm:$0xf]
        %v338 = vld [vmem:[%s304 + $0x84] sm:$0xf]
        %v339 = vld [vmem:[%s304 + $0x88] sm:$0xf]
        %v340 = vld [vmem:[%s304 + $0x8c] sm:$0xf]
        %v341 = vld [vmem:[%s304 + $0x90] sm:$0xf]
        %v342 = vld [vmem:[%s304 + $0x94] sm:$0xf]
        %v343 = vld [vmem:[%s304 + $0x98] sm:$0xf]
        %v344 = vld [vmem:[%s304 + $0x9c] sm:$0xf]
        %v351 = vunpack.c.l.b16 %v300
        %v352 = vunpack.c.h.b16 %v300
        %v353 = vunpack.c.l.b16 %v301
        %v354 = vunpack.c.l.b16 %v258
        %v355 = vunpack.c.h.b16 %v258
        %v356 = vunpack.c.l.b16 %v259
        %v357 = vunpack.c.l.b16 %v302
        %v358 = vunpack.c.h.b16 %v302
        %v359 = vunpack.c.l.b16 %v303
        %v360 = vpack.c.b16 %v354, %v351
        %v361 = vpack.c.b16 %v355, %v352
        %v362 = vpack.c.b16 %v356, %v353
        %v363 = vpack.c.b16 %v357, %v357
        %v364 = vpack.c.b16 %v358, %v358
        %v365 = vpack.c.b16 %v359, %v359
        %vm366 = vcmask 1044480
        %v367 = vrot.slane %v360, 3
        %v368 = vrot.slane %v363, 3
        %v369 = vsel %vm366, %v367, %v368
        %v370 = vrot.slane %v361, 3
        %v371 = vrot.slane %v364, 3
        %v372 = vsel %vm366, %v370, %v371
        %v373 = vrot.slane %v362, 3
        %v374 = vrot.slane %v365, 3
        %v375 = vsel %vm366, %v373, %v374
        %v418 = vunpack.c.l.b16 %v305
        %v419 = vunpack.c.l.b16 %v306
        %v420 = vunpack.c.l.b16 %v307
        %v421 = vunpack.c.l.b16 %v308
        %v422 = vunpack.c.l.b16 %v309
        %v423 = vunpack.c.l.b16 %v310
        %v424 = vunpack.c.l.b16 %v311
        %v425 = vunpack.c.l.b16 %v312
        %v426 = vunpack.c.l.b16 %v313
        %v427 = vunpack.c.l.b16 %v314
        %v428 = vunpack.c.l.b16 %v315
        %v429 = vunpack.c.l.b16 %v316
        %v430 = vunpack.c.l.b16 %v317
        %v431 = vunpack.c.l.b16 %v318
        %v432 = vunpack.c.l.b16 %v319
        %v433 = vunpack.c.l.b16 %v320
        %v434 = vunpack.c.l.b16 %v321
        %v435 = vunpack.c.l.b16 %v322
        %v436 = vunpack.c.l.b16 %v323
        %v437 = vunpack.c.l.b16 %v324
        %v438 = vunpack.c.l.b16 %v325
        %v439 = vunpack.c.l.b16 %v326
        %v440 = vunpack.c.l.b16 %v327
        %v441 = vunpack.c.l.b16 %v328
        %v442 = vunpack.c.l.b16 %v329
        %v443 = vunpack.c.l.b16 %v330
        %v444 = vunpack.c.l.b16 %v331
        %v445 = vunpack.c.l.b16 %v332
        %v446 = vunpack.c.l.b16 %v333
        %v447 = vunpack.c.l.b16 %v334
        %v448 = vunpack.c.l.b16 %v335
        %v449 = vunpack.c.l.b16 %v336
        %v450 = vunpack.c.l.b16 %v337
        %v451 = vunpack.c.l.b16 %v338
        %v452 = vunpack.c.l.b16 %v339
        %v453 = vunpack.c.l.b16 %v340
        %v454 = vunpack.c.l.b16 %v341
        %v455 = vunpack.c.l.b16 %v342
        %v456 = vunpack.c.l.b16 %v343
        %v457 = vunpack.c.l.b16 %v344
        %v458 = vpack.c.b16 %v419, %v418
        %v459 = vpack.c.b16 %v421, %v420
        %v460 = vpack.c.b16 %v423, %v422
        %v461 = vpack.c.b16 %v425, %v424
        %v462 = vpack.c.b16 %v427, %v426
        %v463 = vpack.c.b16 %v429, %v428
        %v464 = vpack.c.b16 %v431, %v430
        %v465 = vpack.c.b16 %v433, %v432
        %v466 = vpack.c.b16 %v435, %v434
        %v467 = vpack.c.b16 %v437, %v436
        %v468 = vpack.c.b16 %v439, %v438
        %v469 = vpack.c.b16 %v441, %v440
        %v470 = vpack.c.b16 %v443, %v442
        %v471 = vpack.c.b16 %v445, %v444
        %v472 = vpack.c.b16 %v447, %v446
        %v473 = vpack.c.b16 %v449, %v448
        %v474 = vpack.c.b16 %v451, %v450
        %v475 = vpack.c.b16 %v453, %v452
        %v476 = vpack.c.b16 %v455, %v454
        %v477 = vpack.c.b16 %v457, %v456
        %vm498 = vcmask 523264
        %v500 = vsel %vm498, %v375, 0
        %502 = vmatpush.bf16.msra.mxu0 %v465
        %503 = vmatpush.bf16.msra.mxu0 %v464
        %504 = vmatpush.bf16.msra.mxu0 %v463
        %505 = vmatpush.bf16.msra.mxu0 %v462
        %506 = vmatpush.bf16.msra.mxu0 %v461
        %507 = vmatpush.bf16.msra.mxu0 %v460
        %508 = vmatpush.bf16.msra.mxu0 %v459
        %509 = vmatpush.bf16.msra.mxu0 %v458
        %510 = vmatmul.bf16.gmra.mxu0 %v369
        %v511 = vpop.f32.mrf.mxu0
        %v512 = vadd.f32 0.0, %v511
        %v513 = vpop.f32.mrf.mxu0
        %v514 = vadd.f32 0.0, %v513
        %515 = vdwg.mxu0
        %516 = vmatpush.bf16.msra.mxu0 %v473
        %517 = vmatpush.bf16.msra.mxu0 %v472
        %518 = vmatpush.bf16.msra.mxu0 %v471
        %519 = vmatpush.bf16.msra.mxu0 %v470
        %520 = vmatpush.bf16.msra.mxu0 %v469
        %521 = vmatpush.bf16.msra.mxu0 %v468
        %522 = vmatpush.bf16.msra.mxu0 %v467
        %523 = vmatpush.bf16.msra.mxu0 %v466
        %524 = vmatmul.bf16.gmra.mxu0 %v372
        %v525 = vpop.f32.mrf.mxu0
        %v526 = vadd.f32 %v512, %v525
        %v527 = vpop.f32.mrf.mxu0
        %v528 = vadd.f32 %v514, %v527
        %529 = vdwg.mxu0
        %530 = vmatpush.bf16.msra.mxu0 0
        %531 = vmatpush.bf16.msra.mxu0 0
        %532 = vmatpush.bf16.msra.mxu0 0
        %533 = vmatpush.bf16.msra.mxu0 0
        %534 = vmatpush.bf16.msra.mxu0 %v477
        %535 = vmatpush.bf16.msra.mxu0 %v476
        %536 = vmatpush.bf16.msra.mxu0 %v475
        %537 = vmatpush.bf16.msra.mxu0 %v474
        %538 = vmatmul.bf16.gmra.mxu0 %v500
        %v539 = vpop.f32.mrf.mxu0
        %v540 = vadd.f32 %v526, %v539
        %v541 = vpop.f32.mrf.mxu0
        %v542 = vadd.f32 %v528, %v541
        %543 = vdwg.mxu0
        %v546 = vunpack.c.l.b16 %v256
        %v547 = vunpack.c.h.b16 %v256
        %v548 = vunpack.c.l.b16 %v257
        %v549 = vpack.c.b16 %v354, %v546
        %v550 = vpack.c.b16 %v355, %v547
        %v551 = vpack.c.b16 %v356, %v548
        %v594 = vunpack.c.l.b16 %v260
        %v595 = vunpack.c.l.b16 %v261
        %v596 = vunpack.c.l.b16 %v262
        %v597 = vunpack.c.l.b16 %v263
        %v598 = vunpack.c.l.b16 %v264
        %v599 = vunpack.c.l.b16 %v265
        %v600 = vunpack.c.l.b16 %v266
        %v601 = vunpack.c.l.b16 %v267
        %v602 = vunpack.c.l.b16 %v268
        %v603 = vunpack.c.l.b16 %v269
        %v604 = vunpack.c.l.b16 %v270
        %v605 = vunpack.c.l.b16 %v271
        %v606 = vunpack.c.l.b16 %v272
        %v607 = vunpack.c.l.b16 %v273
        %v608 = vunpack.c.l.b16 %v274
        %v609 = vunpack.c.l.b16 %v275
        %v610 = vunpack.c.l.b16 %v276
        %v611 = vunpack.c.l.b16 %v277
        %v612 = vunpack.c.l.b16 %v278
        %v613 = vunpack.c.l.b16 %v279
        %v614 = vunpack.c.l.b16 %v280
        %v615 = vunpack.c.l.b16 %v281
        %v616 = vunpack.c.l.b16 %v282
        %v617 = vunpack.c.l.b16 %v283
        %v618 = vunpack.c.l.b16 %v284
        %v619 = vunpack.c.l.b16 %v285
        %v620 = vunpack.c.l.b16 %v286
        %v621 = vunpack.c.l.b16 %v287
        %v622 = vunpack.c.l.b16 %v288
        %v623 = vunpack.c.l.b16 %v289
        %v624 = vunpack.c.l.b16 %v290
        %v625 = vunpack.c.l.b16 %v291
        %v626 = vunpack.c.l.b16 %v292
        %v627 = vunpack.c.l.b16 %v293
        %v628 = vunpack.c.l.b16 %v294
        %v629 = vunpack.c.l.b16 %v295
        %v630 = vunpack.c.l.b16 %v296
        %v631 = vunpack.c.l.b16 %v297
        %v632 = vunpack.c.l.b16 %v298
        %v633 = vunpack.c.l.b16 %v299
        %v634 = vpack.c.b16 %v595, %v594
        %v635 = vpack.c.b16 %v597, %v596
        %v636 = vpack.c.b16 %v599, %v598
        %v637 = vpack.c.b16 %v601, %v600
        %v638 = vpack.c.b16 %v603, %v602
        %v639 = vpack.c.b16 %v605, %v604
        %v640 = vpack.c.b16 %v607, %v606
        %v641 = vpack.c.b16 %v609, %v608
        %v642 = vpack.c.b16 %v611, %v610
        %v643 = vpack.c.b16 %v613, %v612
        %v644 = vpack.c.b16 %v615, %v614
        %v645 = vpack.c.b16 %v617, %v616
        %v646 = vpack.c.b16 %v619, %v618
        %v647 = vpack.c.b16 %v621, %v620
        %v648 = vpack.c.b16 %v623, %v622
        %v649 = vpack.c.b16 %v625, %v624
        %v650 = vpack.c.b16 %v627, %v626
        %v651 = vpack.c.b16 %v629, %v628
        %v652 = vpack.c.b16 %v631, %v630
        %v653 = vpack.c.b16 %v633, %v632
        %v675 = vsel %vm498, %v551, 0
        %677 = vmatpush.bf16.msra.mxu0 %v641
        %678 = vmatpush.bf16.msra.mxu0 %v640
        %679 = vmatpush.bf16.msra.mxu0 %v639
        %680 = vmatpush.bf16.msra.mxu0 %v638
        %681 = vmatpush.bf16.msra.mxu0 %v637
        %682 = vmatpush.bf16.msra.mxu0 %v636
        %683 = vmatpush.bf16.msra.mxu0 %v635
        %684 = vmatpush.bf16.msra.mxu0 %v634
        %685 = vmatmul.bf16.gmra.mxu0 %v549
        %v686 = vpop.f32.mrf.mxu0
        %v687 = vadd.f32 %v540, %v686
        %v688 = vpop.f32.mrf.mxu0
        %v689 = vadd.f32 %v542, %v688
        %690 = vdwg.mxu0
        %691 = vmatpush.bf16.msra.mxu0 %v649
        %692 = vmatpush.bf16.msra.mxu0 %v648
        %693 = vmatpush.bf16.msra.mxu0 %v647
        %694 = vmatpush.bf16.msra.mxu0 %v646
        %695 = vmatpush.bf16.msra.mxu0 %v645
        %696 = vmatpush.bf16.msra.mxu0 %v644
        %697 = vmatpush.bf16.msra.mxu0 %v643
        %698 = vmatpush.bf16.msra.mxu0 %v642
        %699 = vmatmul.bf16.gmra.mxu0 %v550
        %v700 = vpop.f32.mrf.mxu0
        %v701 = vadd.f32 %v687, %v700
        %v702 = vpop.f32.mrf.mxu0
        %v703 = vadd.f32 %v689, %v702
        %704 = vdwg.mxu0
        %705 = vmatpush.bf16.msra.mxu0 0
        %706 = vmatpush.bf16.msra.mxu0 0
        %707 = vmatpush.bf16.msra.mxu0 0
        %708 = vmatpush.bf16.msra.mxu0 0
        %709 = vmatpush.bf16.msra.mxu0 %v653
        %710 = vmatpush.bf16.msra.mxu0 %v652
        %711 = vmatpush.bf16.msra.mxu0 %v651
        %712 = vmatpush.bf16.msra.mxu0 %v650
        %713 = vmatmul.bf16.gmra.mxu0 %v675
        %v714 = vpop.f32.mrf.mxu0
        %v715 = vadd.f32 %v701, %v714
        %v716 = vpop.f32.mrf.mxu0
        %v717 = vadd.f32 %v703, %v716
        %718 = vdwg.mxu0
        %v719 = vld [vmem:[%s212 + $0xc] sm:$0xcc]
        %v720 = vld [vmem:[%s212 + $0x14] sm:$0xc]
        %v721 = vld [vmem:[%s212 + $0x18] sm:$0xff]
        %v722 = vld [vmem:[%s212 + $0x20] sm:$0xf]
        %v723 = vld [vmem:[%s212 + $0x24] sm:$0x33]
        %v724 = vld [vmem:[%s212 + $0x2c] sm:$0x3]
        %s725 = scalar_lea.vmem [#allocation5], 320
        %v726 = vld [vmem:[%s725] sm:$0xf]
        %v727 = vld [vmem:[%s725 + $0x4] sm:$0xf]
        %v728 = vld [vmem:[%s725 + $0x8] sm:$0xf]
        %v729 = vld [vmem:[%s725 + $0xc] sm:$0xf]
        %v730 = vld [vmem:[%s725 + $0x10] sm:$0xf]
        %v731 = vld [vmem:[%s725 + $0x14] sm:$0xf]
        %v732 = vld [vmem:[%s725 + $0x18] sm:$0xf]
        %v733 = vld [vmem:[%s725 + $0x1c] sm:$0xf]
        %v734 = vld [vmem:[%s725 + $0x20] sm:$0xf]
        %v735 = vld [vmem:[%s725 + $0x24] sm:$0xf]
        %v736 = vld [vmem:[%s725 + $0x28] sm:$0xf]
        %v737 = vld [vmem:[%s725 + $0x2c] sm:$0xf]
        %v738 = vld [vmem:[%s725 + $0x30] sm:$0xf]
        %v739 = vld [vmem:[%s725 + $0x34] sm:$0xf]
        %v740 = vld [vmem:[%s725 + $0x38] sm:$0xf]
        %v741 = vld [vmem:[%s725 + $0x3c] sm:$0xf]
        %v742 = vld [vmem:[%s725 + $0x40] sm:$0xf]
        %v743 = vld [vmem:[%s725 + $0x44] sm:$0xf]
        %v744 = vld [vmem:[%s725 + $0x48] sm:$0xf]
        %v745 = vld [vmem:[%s725 + $0x4c] sm:$0xf]
        %v746 = vld [vmem:[%s725 + $0x50] sm:$0xf]
        %v747 = vld [vmem:[%s725 + $0x54] sm:$0xf]
        %v748 = vld [vmem:[%s725 + $0x58] sm:$0xf]
        %v749 = vld [vmem:[%s725 + $0x5c] sm:$0xf]
        %v750 = vld [vmem:[%s725 + $0x60] sm:$0xf]
        %v751 = vld [vmem:[%s725 + $0x64] sm:$0xf]
        %v752 = vld [vmem:[%s725 + $0x68] sm:$0xf]
        %v753 = vld [vmem:[%s725 + $0x6c] sm:$0xf]
        %v754 = vld [vmem:[%s725 + $0x70] sm:$0xf]
        %v755 = vld [vmem:[%s725 + $0x74] sm:$0xf]
        %v756 = vld [vmem:[%s725 + $0x78] sm:$0xf]
        %v757 = vld [vmem:[%s725 + $0x7c] sm:$0xf]
        %v758 = vld [vmem:[%s725 + $0x80] sm:$0xf]
        %v759 = vld [vmem:[%s725 + $0x84] sm:$0xf]
        %v760 = vld [vmem:[%s725 + $0x88] sm:$0xf]
        %v761 = vld [vmem:[%s725 + $0x8c] sm:$0xf]
        %v762 = vld [vmem:[%s725 + $0x90] sm:$0xf]
        %v763 = vld [vmem:[%s725 + $0x94] sm:$0xf]
        %v764 = vld [vmem:[%s725 + $0x98] sm:$0xf]
        %v765 = vld [vmem:[%s725 + $0x9c] sm:$0xf]
        %v772 = vunpack.c.l.b16 %v719
        %v773 = vunpack.c.h.b16 %v719
        %v774 = vunpack.c.l.b16 %v720
        %v775 = vunpack.c.l.b16 %v721
        %v776 = vunpack.c.h.b16 %v721
        %v777 = vunpack.c.l.b16 %v722
        %v778 = vunpack.c.l.b16 %v723
        %v779 = vunpack.c.h.b16 %v723
        %v780 = vunpack.c.l.b16 %v724
        %v781 = vpack.c.b16 %v775, %v772
        %v782 = vpack.c.b16 %v776, %v773
        %v783 = vpack.c.b16 %v777, %v774
        %v784 = vpack.c.b16 %v778, %v778
        %v785 = vpack.c.b16 %v779, %v779
        %v786 = vpack.c.b16 %v780, %v780
        %vm787 = vcmask 1045504
        %v788 = vrot.slane %v781, 2
        %v789 = vrot.slane %v784, 2
        %v790 = vsel %vm787, %v788, %v789
        %v791 = vrot.slane %v782, 2
        %v792 = vrot.slane %v785, 2
        %v793 = vsel %vm787, %v791, %v792
        %v794 = vrot.slane %v783, 2
        %v795 = vrot.slane %v786, 2
        %v796 = vsel %vm787, %v794, %v795
        %v839 = vunpack.c.l.b16 %v726
        %v840 = vunpack.c.l.b16 %v727
        %v841 = vunpack.c.l.b16 %v728
        %v842 = vunpack.c.l.b16 %v729
        %v843 = vunpack.c.l.b16 %v730
        %v844 = vunpack.c.l.b16 %v731
        %v845 = vunpack.c.l.b16 %v732
        %v846 = vunpack.c.l.b16 %v733
        %v847 = vunpack.c.l.b16 %v734
        %v848 = vunpack.c.l.b16 %v735
        %v849 = vunpack.c.l.b16 %v736
        %v850 = vunpack.c.l.b16 %v737
        %v851 = vunpack.c.l.b16 %v738
        %v852 = vunpack.c.l.b16 %v739
        %v853 = vunpack.c.l.b16 %v740
        %v854 = vunpack.c.l.b16 %v741
        %v855 = vunpack.c.l.b16 %v742
        %v856 = vunpack.c.l.b16 %v743
        %v857 = vunpack.c.l.b16 %v744
        %v858 = vunpack.c.l.b16 %v745
        %v859 = vunpack.c.l.b16 %v746
        %v860 = vunpack.c.l.b16 %v747
        %v861 = vunpack.c.l.b16 %v748
        %v862 = vunpack.c.l.b16 %v749
        %v863 = vunpack.c.l.b16 %v750
        %v864 = vunpack.c.l.b16 %v751
        %v865 = vunpack.c.l.b16 %v752
        %v866 = vunpack.c.l.b16 %v753
        %v867 = vunpack.c.l.b16 %v754
        %v868 = vunpack.c.l.b16 %v755
        %v869 = vunpack.c.l.b16 %v756
        %v870 = vunpack.c.l.b16 %v757
        %v871 = vunpack.c.l.b16 %v758
        %v872 = vunpack.c.l.b16 %v759
        %v873 = vunpack.c.l.b16 %v760
        %v874 = vunpack.c.l.b16 %v761
        %v875 = vunpack.c.l.b16 %v762
        %v876 = vunpack.c.l.b16 %v763
        %v877 = vunpack.c.l.b16 %v764
        %v878 = vunpack.c.l.b16 %v765
        %v879 = vpack.c.b16 %v840, %v839
        %v880 = vpack.c.b16 %v842, %v841
        %v881 = vpack.c.b16 %v844, %v843
        %v882 = vpack.c.b16 %v846, %v845
        %v883 = vpack.c.b16 %v848, %v847
        %v884 = vpack.c.b16 %v850, %v849
        %v885 = vpack.c.b16 %v852, %v851
        %v886 = vpack.c.b16 %v854, %v853
        %v887 = vpack.c.b16 %v856, %v855
        %v888 = vpack.c.b16 %v858, %v857
        %v889 = vpack.c.b16 %v860, %v859
        %v890 = vpack.c.b16 %v862, %v861
        %v891 = vpack.c.b16 %v864, %v863
        %v892 = vpack.c.b16 %v866, %v865
        %v893 = vpack.c.b16 %v868, %v867
        %v894 = vpack.c.b16 %v870, %v869
        %v895 = vpack.c.b16 %v872, %v871
        %v896 = vpack.c.b16 %v874, %v873
        %v897 = vpack.c.b16 %v876, %v875
        %v898 = vpack.c.b16 %v878, %v877
        %v920 = vsel %vm498, %v796, 0
        %922 = vmatpush.bf16.msra.mxu0 %v886
        %923 = vmatpush.bf16.msra.mxu0 %v885
        %924 = vmatpush.bf16.msra.mxu0 %v884
        %925 = vmatpush.bf16.msra.mxu0 %v883
        %926 = vmatpush.bf16.msra.mxu0 %v882
        %927 = vmatpush.bf16.msra.mxu0 %v881
        %928 = vmatpush.bf16.msra.mxu0 %v880
        %929 = vmatpush.bf16.msra.mxu0 %v879
        %930 = vmatmul.bf16.gmra.mxu0 %v790
        %v931 = vpop.f32.mrf.mxu0
        %v932 = vadd.f32 0.0, %v931
        %v933 = vpop.f32.mrf.mxu0
        %v934 = vadd.f32 0.0, %v933
        %935 = vdwg.mxu0
        %936 = vmatpush.bf16.msra.mxu0 %v894
        %937 = vmatpush.bf16.msra.mxu0 %v893
        %938 = vmatpush.bf16.msra.mxu0 %v892
        %939 = vmatpush.bf16.msra.mxu0 %v891
        %940 = vmatpush.bf16.msra.mxu0 %v890
        %941 = vmatpush.bf16.msra.mxu0 %v889
        %942 = vmatpush.bf16.msra.mxu0 %v888
        %943 = vmatpush.bf16.msra.mxu0 %v887
        %944 = vmatmul.bf16.gmra.mxu0 %v793
        %v945 = vpop.f32.mrf.mxu0
        %v946 = vadd.f32 %v932, %v945
        %v947 = vpop.f32.mrf.mxu0
        %v948 = vadd.f32 %v934, %v947
        %949 = vdwg.mxu0
        %950 = vmatpush.bf16.msra.mxu0 0
        %951 = vmatpush.bf16.msra.mxu0 0
        %952 = vmatpush.bf16.msra.mxu0 0
        %953 = vmatpush.bf16.msra.mxu0 0
        %954 = vmatpush.bf16.msra.mxu0 %v898
        %955 = vmatpush.bf16.msra.mxu0 %v897
        %956 = vmatpush.bf16.msra.mxu0 %v896
        %957 = vmatpush.bf16.msra.mxu0 %v895
        %958 = vmatmul.bf16.gmra.mxu0 %v920
        %v959 = vpop.f32.mrf.mxu0
        %v960 = vadd.f32 %v946, %v959
        %v961 = vpop.f32.mrf.mxu0
        %v962 = vadd.f32 %v948, %v961
        %963 = vdwg.mxu0
        %v964 = vadd.f32 %v715, %v960
        %v965 = vadd.f32 %v717, %v962
        %v966 = vld [vmem:[%s212 + $0x18] sm:$0xee]
        %v967 = vld [vmem:[%s212 + $0x20] sm:$0xe]
        %v968 = vld [vmem:[%s212 + $0x24] sm:$0xff]
        %v969 = vld [vmem:[%s212 + $0x2c] sm:$0xf]
        %v970 = vld [vmem:[%s212 + $0x30] sm:$0x11]
        %v971 = vld [vmem:[%s212 + $0x38] sm:$0x1]
        %s972 = scalar_lea.vmem [#allocation5], 480
        %v973 = vld [vmem:[%s972] sm:$0xf]
        %v974 = vld [vmem:[%s972 + $0x4] sm:$0xf]
        %v975 = vld [vmem:[%s972 + $0x8] sm:$0xf]
        %v976 = vld [vmem:[%s972 + $0xc] sm:$0xf]
        %v977 = vld [vmem:[%s972 + $0x10] sm:$0xf]
        %v978 = vld [vmem:[%s972 + $0x14] sm:$0xf]
        %v979 = vld [vmem:[%s972 + $0x18] sm:$0xf]
        %v980 = vld [vmem:[%s972 + $0x1c] sm:$0xf]
        %v981 = vld [vmem:[%s972 + $0x20] sm:$0xf]
        %v982 = vld [vmem:[%s972 + $0x24] sm:$0xf]
        %v983 = vld [vmem:[%s972 + $0x28] sm:$0xf]
        %v984 = vld [vmem:[%s972 + $0x2c] sm:$0xf]
        %v985 = vld [vmem:[%s972 + $0x30] sm:$0xf]
        %v986 = vld [vmem:[%s972 + $0x34] sm:$0xf]
        %v987 = vld [vmem:[%s972 + $0x38] sm:$0xf]
        %v988 = vld [vmem:[%s972 + $0x3c] sm:$0xf]
        %v989 = vld [vmem:[%s972 + $0x40] sm:$0xf]
        %v990 = vld [vmem:[%s972 + $0x44] sm:$0xf]
        %v991 = vld [vmem:[%s972 + $0x48] sm:$0xf]
        %v992 = vld [vmem:[%s972 + $0x4c] sm:$0xf]
        %v993 = vld [vmem:[%s972 + $0x50] sm:$0xf]
        %v994 = vld [vmem:[%s972 + $0x54] sm:$0xf]
        %v995 = vld [vmem:[%s972 + $0x58] sm:$0xf]
        %v996 = vld [vmem:[%s972 + $0x5c] sm:$0xf]
        %v997 = vld [vmem:[%s972 + $0x60] sm:$0xf]
        %v998 = vld [vmem:[%s972 + $0x64] sm:$0xf]
        %v999 = vld [vmem:[%s972 + $0x68] sm:$0xf]
        %v1000 = vld [vmem:[%s972 + $0x6c] sm:$0xf]
        %v1001 = vld [vmem:[%s972 + $0x70] sm:$0xf]
        %v1002 = vld [vmem:[%s972 + $0x74] sm:$0xf]
        %v1003 = vld [vmem:[%s972 + $0x78] sm:$0xf]
        %v1004 = vld [vmem:[%s972 + $0x7c] sm:$0xf]
        %v1005 = vld [vmem:[%s972 + $0x80] sm:$0xf]
        %v1006 = vld [vmem:[%s972 + $0x84] sm:$0xf]
        %v1007 = vld [vmem:[%s972 + $0x88] sm:$0xf]
        %v1008 = vld [vmem:[%s972 + $0x8c] sm:$0xf]
        %v1009 = vld [vmem:[%s972 + $0x90] sm:$0xf]
        %v1010 = vld [vmem:[%s972 + $0x94] sm:$0xf]
        %v1011 = vld [vmem:[%s972 + $0x98] sm:$0xf]
        %v1012 = vld [vmem:[%s972 + $0x9c] sm:$0xf]
        %v1019 = vunpack.c.l.b16 %v966
        %v1020 = vunpack.c.h.b16 %v966
        %v1021 = vunpack.c.l.b16 %v967
        %v1022 = vunpack.c.l.b16 %v968
        %v1023 = vunpack.c.h.b16 %v968
        %v1024 = vunpack.c.l.b16 %v969
        %v1025 = vunpack.c.l.b16 %v970
        %v1026 = vunpack.c.h.b16 %v970
        %v1027 = vunpack.c.l.b16 %v971
        %v1028 = vpack.c.b16 %v1022, %v1019
        %v1029 = vpack.c.b16 %v1023, %v1020
        %v1030 = vpack.c.b16 %v1024, %v1021
        %v1031 = vpack.c.b16 %v1025, %v1025
        %v1032 = vpack.c.b16 %v1026, %v1026
        %v1033 = vpack.c.b16 %v1027, %v1027
        %vm1034 = vcmask 1046528
        %v1035 = vrot.slane %v1028, 1
        %v1036 = vrot.slane %v1031, 1
        %v1037 = vsel %vm1034, %v1035, %v1036
        %v1038 = vrot.slane %v1029, 1
        %v1039 = vrot.slane %v1032, 1
        %v1040 = vsel %vm1034, %v1038, %v1039
        %v1041 = vrot.slane %v1030, 1
        %v1042 = vrot.slane %v1033, 1
        %v1043 = vsel %vm1034, %v1041, %v1042
        %v1086 = vunpack.c.l.b16 %v973
        %v1087 = vunpack.c.l.b16 %v974
        %v1088 = vunpack.c.l.b16 %v975
        %v1089 = vunpack.c.l.b16 %v976
        %v1090 = vunpack.c.l.b16 %v977
        %v1091 = vunpack.c.l.b16 %v978
        %v1092 = vunpack.c.l.b16 %v979
        %v1093 = vunpack.c.l.b16 %v980
        %v1094 = vunpack.c.l.b16 %v981
        %v1095 = vunpack.c.l.b16 %v982
        %v1096 = vunpack.c.l.b16 %v983
        %v1097 = vunpack.c.l.b16 %v984
        %v1098 = vunpack.c.l.b16 %v985
        %v1099 = vunpack.c.l.b16 %v986
        %v1100 = vunpack.c.l.b16 %v987
        %v1101 = vunpack.c.l.b16 %v988
        %v1102 = vunpack.c.l.b16 %v989
        %v1103 = vunpack.c.l.b16 %v990
        %v1104 = vunpack.c.l.b16 %v991
        %v1105 = vunpack.c.l.b16 %v992
        %v1106 = vunpack.c.l.b16 %v993
        %v1107 = vunpack.c.l.b16 %v994
        %v1108 = vunpack.c.l.b16 %v995
        %v1109 = vunpack.c.l.b16 %v996
        %v1110 = vunpack.c.l.b16 %v997
        %v1111 = vunpack.c.l.b16 %v998
        %v1112 = vunpack.c.l.b16 %v999
        %v1113 = vunpack.c.l.b16 %v1000
        %v1114 = vunpack.c.l.b16 %v1001
        %v1115 = vunpack.c.l.b16 %v1002
        %v1116 = vunpack.c.l.b16 %v1003
        %v1117 = vunpack.c.l.b16 %v1004
        %v1118 = vunpack.c.l.b16 %v1005
        %v1119 = vunpack.c.l.b16 %v1006
        %v1120 = vunpack.c.l.b16 %v1007
        %v1121 = vunpack.c.l.b16 %v1008
        %v1122 = vunpack.c.l.b16 %v1009
        %v1123 = vunpack.c.l.b16 %v1010
        %v1124 = vunpack.c.l.b16 %v1011
        %v1125 = vunpack.c.l.b16 %v1012
        %v1126 = vpack.c.b16 %v1087, %v1086
        %v1127 = vpack.c.b16 %v1089, %v1088
        %v1128 = vpack.c.b16 %v1091, %v1090
        %v1129 = vpack.c.b16 %v1093, %v1092
        %v1130 = vpack.c.b16 %v1095, %v1094
        %v1131 = vpack.c.b16 %v1097, %v1096
        %v1132 = vpack.c.b16 %v1099, %v1098
        %v1133 = vpack.c.b16 %v1101, %v1100
        %v1134 = vpack.c.b16 %v1103, %v1102
        %v1135 = vpack.c.b16 %v1105, %v1104
        %v1136 = vpack.c.b16 %v1107, %v1106
        %v1137 = vpack.c.b16 %v1109, %v1108
        %v1138 = vpack.c.b16 %v1111, %v1110
        %v1139 = vpack.c.b16 %v1113, %v1112
        %v1140 = vpack.c.b16 %v1115, %v1114
        %v1141 = vpack.c.b16 %v1117, %v1116
        %v1142 = vpack.c.b16 %v1119, %v1118
        %v1143 = vpack.c.b16 %v1121, %v1120
        %v1144 = vpack.c.b16 %v1123, %v1122
        %v1145 = vpack.c.b16 %v1125, %v1124
        %v1167 = vsel %vm498, %v1043, 0
        %1169 = vmatpush.bf16.msra.mxu0 %v1133
        %1170 = vmatpush.bf16.msra.mxu0 %v1132
        %1171 = vmatpush.bf16.msra.mxu0 %v1131
        %1172 = vmatpush.bf16.msra.mxu0 %v1130
        %1173 = vmatpush.bf16.msra.mxu0 %v1129
        %1174 = vmatpush.bf16.msra.mxu0 %v1128
        %1175 = vmatpush.bf16.msra.mxu0 %v1127
        %1176 = vmatpush.bf16.msra.mxu0 %v1126
        %1177 = vmatmul.bf16.gmra.mxu0 %v1037
        %v1178 = vpop.f32.mrf.mxu0
        %v1179 = vadd.f32 0.0, %v1178
        %v1180 = vpop.f32.mrf.mxu0
        %v1181 = vadd.f32 0.0, %v1180
        %1182 = vdwg.mxu0
        %1183 = vmatpush.bf16.msra.mxu0 %v1141
        %1184 = vmatpush.bf16.msra.mxu0 %v1140
        %1185 = vmatpush.bf16.msra.mxu0 %v1139
        %1186 = vmatpush.bf16.msra.mxu0 %v1138
        %1187 = vmatpush.bf16.msra.mxu0 %v1137
        %1188 = vmatpush.bf16.msra.mxu0 %v1136
        %1189 = vmatpush.bf16.msra.mxu0 %v1135
        %1190 = vmatpush.bf16.msra.mxu0 %v1134
        %1191 = vmatmul.bf16.gmra.mxu0 %v1040
        %v1192 = vpop.f32.mrf.mxu0
        %v1193 = vadd.f32 %v1179, %v1192
        %v1194 = vpop.f32.mrf.mxu0
        %v1195 = vadd.f32 %v1181, %v1194
        %1196 = vdwg.mxu0
        %1197 = vmatpush.bf16.msra.mxu0 0
        %1198 = vmatpush.bf16.msra.mxu0 0
        %1199 = vmatpush.bf16.msra.mxu0 0
        %1200 = vmatpush.bf16.msra.mxu0 0
        %1201 = vmatpush.bf16.msra.mxu0 %v1145
        %1202 = vmatpush.bf16.msra.mxu0 %v1144
        %1203 = vmatpush.bf16.msra.mxu0 %v1143
        %1204 = vmatpush.bf16.msra.mxu0 %v1142
        %1205 = vmatmul.bf16.gmra.mxu0 %v1167
        %v1206 = vpop.f32.mrf.mxu0
        %v1207 = vadd.f32 %v1193, %v1206
        %v1208 = vpop.f32.mrf.mxu0
        %v1209 = vadd.f32 %v1195, %v1208
        %1210 = vdwg.mxu0
        %v1211 = vadd.f32 %v964, %v1207
        %v1212 = vadd.f32 %v965, %v1209
        %v1213 = vld [vmem:[%s212 + $0x30] sm:$0xff]
        %v1214 = vld [vmem:[%s212 + $0x38] sm:$0xf]
        %s1215 = scalar_lea.vmem [#allocation5], 640
        %v1216 = vld [vmem:[%s1215] sm:$0xf]
        %v1217 = vld [vmem:[%s1215 + $0x4] sm:$0xf]
        %v1218 = vld [vmem:[%s1215 + $0x8] sm:$0xf]
        %v1219 = vld [vmem:[%s1215 + $0xc] sm:$0xf]
        %v1220 = vld [vmem:[%s1215 + $0x10] sm:$0xf]
        %v1221 = vld [vmem:[%s1215 + $0x14] sm:$0xf]
        %v1222 = vld [vmem:[%s1215 + $0x18] sm:$0xf]
        %v1223 = vld [vmem:[%s1215 + $0x1c] sm:$0xf]
        %v1224 = vld [vmem:[%s1215 + $0x20] sm:$0xf]
        %v1225 = vld [vmem:[%s1215 + $0x24] sm:$0xf]
        %v1226 = vld [vmem:[%s1215 + $0x28] sm:$0xf]
        %v1227 = vld [vmem:[%s1215 + $0x2c] sm:$0xf]
        %v1228 = vld [vmem:[%s1215 + $0x30] sm:$0xf]
        %v1229 = vld [vmem:[%s1215 + $0x34] sm:$0xf]
        %v1230 = vld [vmem:[%s1215 + $0x38] sm:$0xf]
        %v1231 = vld [vmem:[%s1215 + $0x3c] sm:$0xf]
        %v1232 = vld [vmem:[%s1215 + $0x40] sm:$0xf]
        %v1233 = vld [vmem:[%s1215 + $0x44] sm:$0xf]
        %v1234 = vld [vmem:[%s1215 + $0x48] sm:$0xf]
        %v1235 = vld [vmem:[%s1215 + $0x4c] sm:$0xf]
        %v1236 = vld [vmem:[%s1215 + $0x50] sm:$0xf]
        %v1237 = vld [vmem:[%s1215 + $0x54] sm:$0xf]
        %v1238 = vld [vmem:[%s1215 + $0x58] sm:$0xf]
        %v1239 = vld [vmem:[%s1215 + $0x5c] sm:$0xf]
        %v1240 = vld [vmem:[%s1215 + $0x60] sm:$0xf]
        %v1241 = vld [vmem:[%s1215 + $0x64] sm:$0xf]
        %v1242 = vld [vmem:[%s1215 + $0x68] sm:$0xf]
        %v1243 = vld [vmem:[%s1215 + $0x6c] sm:$0xf]
        %v1244 = vld [vmem:[%s1215 + $0x70] sm:$0xf]
        %v1245 = vld [vmem:[%s1215 + $0x74] sm:$0xf]
        %v1246 = vld [vmem:[%s1215 + $0x78] sm:$0xf]
        %v1247 = vld [vmem:[%s1215 + $0x7c] sm:$0xf]
        %v1248 = vld [vmem:[%s1215 + $0x80] sm:$0xf]
        %v1249 = vld [vmem:[%s1215 + $0x84] sm:$0xf]
        %v1250 = vld [vmem:[%s1215 + $0x88] sm:$0xf]
        %v1251 = vld [vmem:[%s1215 + $0x8c] sm:$0xf]
        %v1252 = vld [vmem:[%s1215 + $0x90] sm:$0xf]
        %v1253 = vld [vmem:[%s1215 + $0x94] sm:$0xf]
        %v1254 = vld [vmem:[%s1215 + $0x98] sm:$0xf]
        %v1255 = vld [vmem:[%s1215 + $0x9c] sm:$0xf]
        %v1258 = vunpack.c.l.b16 %v1213
        %v1259 = vunpack.c.h.b16 %v1213
        %v1260 = vunpack.c.l.b16 %v1214
        %v1261 = vpack.c.b16 %v1258, %v1022
        %v1262 = vpack.c.b16 %v1259, %v1023
        %v1263 = vpack.c.b16 %v1260, %v1024
        %v1306 = vunpack.c.l.b16 %v1216
        %v1307 = vunpack.c.l.b16 %v1217
        %v1308 = vunpack.c.l.b16 %v1218
        %v1309 = vunpack.c.l.b16 %v1219
        %v1310 = vunpack.c.l.b16 %v1220
        %v1311 = vunpack.c.l.b16 %v1221
        %v1312 = vunpack.c.l.b16 %v1222
        %v1313 = vunpack.c.l.b16 %v1223
        %v1314 = vunpack.c.l.b16 %v1224
        %v1315 = vunpack.c.l.b16 %v1225
        %v1316 = vunpack.c.l.b16 %v1226
        %v1317 = vunpack.c.l.b16 %v1227
        %v1318 = vunpack.c.l.b16 %v1228
        %v1319 = vunpack.c.l.b16 %v1229
        %v1320 = vunpack.c.l.b16 %v1230
        %v1321 = vunpack.c.l.b16 %v1231
        %v1322 = vunpack.c.l.b16 %v1232
        %v1323 = vunpack.c.l.b16 %v1233
        %v1324 = vunpack.c.l.b16 %v1234
        %v1325 = vunpack.c.l.b16 %v1235
        %v1326 = vunpack.c.l.b16 %v1236
        %v1327 = vunpack.c.l.b16 %v1237
        %v1328 = vunpack.c.l.b16 %v1238
        %v1329 = vunpack.c.l.b16 %v1239
        %v1330 = vunpack.c.l.b16 %v1240
        %v1331 = vunpack.c.l.b16 %v1241
        %v1332 = vunpack.c.l.b16 %v1242
        %v1333 = vunpack.c.l.b16 %v1243
        %v1334 = vunpack.c.l.b16 %v1244
        %v1335 = vunpack.c.l.b16 %v1245
        %v1336 = vunpack.c.l.b16 %v1246
        %v1337 = vunpack.c.l.b16 %v1247
        %v1338 = vunpack.c.l.b16 %v1248
        %v1339 = vunpack.c.l.b16 %v1249
        %v1340 = vunpack.c.l.b16 %v1250
        %v1341 = vunpack.c.l.b16 %v1251
        %v1342 = vunpack.c.l.b16 %v1252
        %v1343 = vunpack.c.l.b16 %v1253
        %v1344 = vunpack.c.l.b16 %v1254
        %v1345 = vunpack.c.l.b16 %v1255
        %v1346 = vpack.c.b16 %v1307, %v1306
        %v1347 = vpack.c.b16 %v1309, %v1308
        %v1348 = vpack.c.b16 %v1311, %v1310
        %v1349 = vpack.c.b16 %v1313, %v1312
        %v1350 = vpack.c.b16 %v1315, %v1314
        %v1351 = vpack.c.b16 %v1317, %v1316
        %v1352 = vpack.c.b16 %v1319, %v1318
        %v1353 = vpack.c.b16 %v1321, %v1320
        %v1354 = vpack.c.b16 %v1323, %v1322
        %v1355 = vpack.c.b16 %v1325, %v1324
        %v1356 = vpack.c.b16 %v1327, %v1326
        %v1357 = vpack.c.b16 %v1329, %v1328
        %v1358 = vpack.c.b16 %v1331, %v1330
        %v1359 = vpack.c.b16 %v1333, %v1332
        %v1360 = vpack.c.b16 %v1335, %v1334
        %v1361 = vpack.c.b16 %v1337, %v1336
        %v1362 = vpack.c.b16 %v1339, %v1338
        %v1363 = vpack.c.b16 %v1341, %v1340
        %v1364 = vpack.c.b16 %v1343, %v1342
        %v1365 = vpack.c.b16 %v1345, %v1344
        %v1387 = vsel %vm498, %v1263, 0
        %1389 = vmatpush.bf16.msra.mxu0 %v1353
        %1390 = vmatpush.bf16.msra.mxu0 %v1352
        %1391 = vmatpush.bf16.msra.mxu0 %v1351
        %1392 = vmatpush.bf16.msra.mxu0 %v1350
        %1393 = vmatpush.bf16.msra.mxu0 %v1349
        %1394 = vmatpush.bf16.msra.mxu0 %v1348
        %1395 = vmatpush.bf16.msra.mxu0 %v1347
        %1396 = vmatpush.bf16.msra.mxu0 %v1346
        %1397 = vmatmul.bf16.gmra.mxu0 %v1261
        %v1398 = vpop.f32.mrf.mxu0
        %v1399 = vadd.f32 0.0, %v1398
        %v1400 = vpop.f32.mrf.mxu0
        %v1401 = vadd.f32 0.0, %v1400
        %1402 = vdwg.mxu0
        %1403 = vmatpush.bf16.msra.mxu0 %v1361
        %1404 = vmatpush.bf16.msra.mxu0 %v1360
        %1405 = vmatpush.bf16.msra.mxu0 %v1359
        %1406 = vmatpush.bf16.msra.mxu0 %v1358
        %1407 = vmatpush.bf16.msra.mxu0 %v1357
        %1408 = vmatpush.bf16.msra.mxu0 %v1356
        %1409 = vmatpush.bf16.msra.mxu0 %v1355
        %1410 = vmatpush.bf16.msra.mxu0 %v1354
        %1411 = vmatmul.bf16.gmra.mxu0 %v1262
        %v1412 = vpop.f32.mrf.mxu0
        %v1413 = vadd.f32 %v1399, %v1412
        %v1414 = vpop.f32.mrf.mxu0
        %v1415 = vadd.f32 %v1401, %v1414
        %1416 = vdwg.mxu0
        %1417 = vmatpush.bf16.msra.mxu0 0
        %1418 = vmatpush.bf16.msra.mxu0 0
        %1419 = vmatpush.bf16.msra.mxu0 0
        %1420 = vmatpush.bf16.msra.mxu0 0
        %1421 = vmatpush.bf16.msra.mxu0 %v1365
        %1422 = vmatpush.bf16.msra.mxu0 %v1364
        %1423 = vmatpush.bf16.msra.mxu0 %v1363
        %1424 = vmatpush.bf16.msra.mxu0 %v1362
        %1425 = vmatmul.bf16.gmra.mxu0 %v1387
        %v1426 = vpop.f32.mrf.mxu0
        %v1427 = vadd.f32 %v1413, %v1426
        %v1428 = vpop.f32.mrf.mxu0
        %v1429 = vadd.f32 %v1415, %v1428
        %1430 = vdwg.mxu0
        %v1431 = vadd.f32 %v1211, %v1427
        %v1432 = vadd.f32 %v1212, %v1429
        %v1433 = vld [vmem:[%s226] sm:$0x1]
        %v1435 = vperm.slane %v1433, 0
        %v1437 = vadd.f32 %v1431, %v1435
        %v1438 = vadd.f32 %v1432, %v1435
        %1439 = vst [vmem:[%s253] sm:$0xff] %v1437
        %1440 = vst [vmem:[%s253 + $0x8] sm:$0xff] %v1438
        %s1441 = sand.u32 %s116, 1
        %s1442 = scalar_lea.sflag [#allocation4], %s1441
        %s1443 = sand.u32 %s116, 1
        %s1444 = smul.addr %s1443, 16
        %s1445 = scalar_lea.vmem [#allocation8], %s1444
        // Predicated region
        $region45: #{tpu_custom_call.1} parent=31 // pred_check
          %p1446 = pneg %p126
        $region46: #{tpu_custom_call.1} parent=31 // pred_check_branch
          %1448 = sbr.rel (%p1446) target = $region48
        $region47: #{tpu_custom_call.1} parent=31 // pred_region
          %s1449 = smul.u32 2, %s26
          %1451 = vsyncadd %s1442, 0
          %s1452 = smul.addr %s25, 2
          %s1453 = sadd.s32 %s1449, %s1452
          %s1454 = smul.addr %s1453, 8
          %s1455 = scalar_lea.hbm %s3, %s1454
          %s1456 = sshll.u32 %s1445, 4
          %s1457 = int_to_ptr.vmem [resolvable:$true] %s1456
          %s1458 = sshll.u32 %s1455, 4
          %s1459 = int_to_ptr.hbm [resolvable:$true] %s1458
          %1464 = dma.vmem_to_hbm [thread:$0]  %s1457, 256, %s1459, %s1442, 128, 128, 8
        $region48: #{tpu_custom_call.1} parent=31 // pred_fallthru
          _
      $region32: #{tpu_custom_call.1} parent=5 // pred_fallthru
        _
      %p1465 = scmp.le.s32.totalorder 2, %s16
      // Predicated region
      $region49: #{tpu_custom_call.1} parent=5 // pred_check
        %p1466 = pneg %p1465
      $region50: #{tpu_custom_call.1} parent=5 // pred_check_branch
        %1468 = sbr.rel (%p1466) target = $region52
      $region51: #{tpu_custom_call.1} parent=5 // pred_region
        %s1469 = ssub.s32 %s16, 2
        // Predicated region
        $region53: #{tpu_custom_call.1} parent=51 // pred_check
          %p1470 = pneg %p132
        $region54: #{tpu_custom_call.1} parent=51 // pred_check_branch
          %1472 = sbr.rel (%p1470) target = $region56
        $region55: #{tpu_custom_call.1} parent=51 // pred_region
          %s1473 = sand.u32 %s117, 1
          %s1474 = scalar_lea.sflag [#allocation4], %s1473
          %s1475 = sand.u32 %s117, 1
          %s1476 = smul.addr %s1475, 16
          %s1477 = scalar_lea.vmem [#allocation8], %s1476
          %1479 = dma.done %s1474, 256
        $region56: #{tpu_custom_call.1} parent=51 // pred_fallthru
          _
      $region52: #{tpu_custom_call.1} parent=5 // pred_fallthru
        _
    $region6: #{tpu_custom_call.1} parent=1 // loop_footer
      %s20 = sadd.s32 1, %s16
    $region7: #{tpu_custom_call.1} parent=1 // loop_footer_branch
      %15 = sbr.rel target = $region3
    $region8: #{tpu_custom_call.1} parent=1 // loop_exit
      _
    %1480 = vsyncpa [#allocation3], 1
    %s1481 = scalar_lea.sflag [#allocation3], 1
    %1482 = vsyncpa %s1481, 1
    %1483 = vsyncpa [#allocation6], 1
    %1484 = vsyncpa [#allocation4], 1
    %s1485 = scalar_lea.sflag [#allocation4], 1
    %1486 = vsyncpa %s1485, 1

</llo_original>
